<compile_context>
chip_gen: v7x
topology: tpu7x:2x2x1
jax: 0.10.0
libtpu: 0.0.40
codegen_flags: <defaults>
</compile_context>

<pallas_src>
import math

import jax
import jax.numpy as jnp
from jax.experimental import pallas as pl
from jax.experimental.pallas import tpu as pltpu


# ----------------------------- DCT utilities -------------------------------

def dct_matrix(n: int) -> jnp.ndarray:
    """Orthonormal DCT-II matrix D such that dct(v) = D @ v (norm='ortho')."""
    i = jnp.arange(n, dtype=jnp.float32)
    d = jnp.cos(jnp.pi * (2.0 * i[None, :] + 1.0) * i[:, None] / (2.0 * n))
    d = d * jnp.sqrt(2.0 / n)
    d = d.at[0, :].multiply(1.0 / jnp.sqrt(2.0))
    return d


def padded_dct_matrices(h, w, out_h, out_w):
    """DCT matrices with the right/bottom zero-pad folded in.

    dh_pad  : (out_h, h) == [D_H ; 0]     (extra rows are zero)
    dwt_pad : (w, out_w) == [D_W^T , 0]   (extra cols are zero)
    so   dh_pad @ X @ dwt_pad == ZeroPad2d_right_bottom(D_H @ X @ D_W^T).
    (If out < in this also reproduces ZeroPad2d's negative-pad cropping.)
    """
    dh = dct_matrix(h)
    dwt = dct_matrix(w).T
    kh = min(h, out_h)
    kw = min(w, out_w)
    dh_pad = jnp.zeros((out_h, h), jnp.float32).at[:kh, :].set(dh[:kh, :])
    dwt_pad = jnp.zeros((w, out_w), jnp.float32).at[:, :kw].set(dwt[:, :kw])
    return dh_pad, dwt_pad


# ----------------------------- Pallas kernel -------------------------------

def _dct2d_pad_kernel(x_ref, dhp_ref, dwtp_ref, o_ref):
    # x_ref    : (TN, H, W)       TN input planes, native dtype
    # dhp_ref  : (outH, H)        row-DCT matrix (bottom-pad folded in), resident
    # dwtp_ref : (W, outW)        col-DCT^T matrix (right-pad folded in), resident
    # o_ref    : (TN, outH, outW) padded 2-D DCT of each plane
    tn, h, w = x_ref.shape
    out_h = dhp_ref.shape[0]
    out_w = dwtp_ref.shape[1]

    x = x_ref[...].astype(jnp.float32)                       # cast in-kernel
    dwtp = jnp.broadcast_to(dwtp_ref[...], (tn, w, out_w))   # once per step
    dhp = jnp.broadcast_to(dhp_ref[...], (tn, out_h, h))

    # W transform + right zero-pad:  X @ D_W_pad^T          -> (TN, H, outW)
    y = jnp.einsum("nhw,nwo->nho", x, dwtp,
                   preferred_element_type=jnp.float32)
    # H transform + bottom zero-pad: D_H_pad @ (...)        -> (TN, outH, outW)
    o_ref[...] = jnp.einsum("nih,nho->nio", dhp, y,
                            preferred_element_type=jnp.float32)


def _choose_block_planes(n: int, cap: int = 64) -> int:
    """Planes per grid step: batch as many as possible (<= cap) while keeping
    >= 2 grid steps when n > 1 (so v7x can shard the plane axis across its two
    TensorCores) and keeping the block count an exact divisor of n."""
    if n <= 1:
        return max(n, 1)
    tn = max(1, min(cap, n // 2))
    while n % tn != 0:
        tn -= 1
    return tn


def dct2d_pad_pallas(x_flat: jnp.ndarray, out_h: int, out_w: int) -> jnp.ndarray:
    """Right/bottom zero-padded 2-D orthonormal DCT-II of (N, H, W) planes."""
    n, h, w = x_flat.shape
    dh_pad, dwt_pad = padded_dct_matrices(h, w, out_h, out_w)
    tn = _choose_block_planes(n)
    grid = n // tn

    # Advisory cost for XLA scheduling around the custom call.
    flops = int(2 * n * h * out_w * (w + out_h))
    bytes_accessed = int(
        x_flat.size * x_flat.dtype.itemsize          # input planes
        + n * out_h * out_w * 4                      # padded output
        + (dh_pad.size + dwt_pad.size) * 4           # resident DCT matrices
    )

    return pl.pallas_call(
        _dct2d_pad_kernel,
        out_shape=jax.ShapeDtypeStruct((n, out_h, out_w), jnp.float32),
        grid_spec=pltpu.PrefetchScalarGridSpec(
            num_scalar_prefetch=0,
            grid=(grid,),
            in_specs=[
                pl.BlockSpec((tn, h, w), lambda i: (i, 0, 0)),      # TN planes/step
                pl.BlockSpec((out_h, h), lambda i: (0, 0)),         # D_H_pad (resident)
                pl.BlockSpec((w, out_w), lambda i: (0, 0)),         # D_W_pad^T (resident)
            ],
            out_specs=pl.BlockSpec((tn, out_h, out_w), lambda i: (i, 0, 0)),
        ),
        compiler_params=pltpu.CompilerParams(
            dimension_semantics=("parallel",)),
        cost_estimate=pl.CostEstimate(
            flops=flops, transcendentals=0, bytes_accessed=bytes_accessed),
    )(x_flat, dh_pad, dwt_pad)


# ------------------------- (dead-code) parameters ---------------------------

def init_params(key):
    """Deterministic init of the H2A2SR trunk (conv1, R1..R5, t).  These mirror
    the __init__ shapes but never affect the return value (the PyTorch forward
    returns `x`, the padded DCT of the input)."""
    def conv_p(k, cout, cin, ks):
        kw, _ = jax.random.split(k)
        fan = cin * ks * ks
        return {
            "w": jax.random.normal(kw, (cout, cin, ks, ks), jnp.float32) / math.sqrt(fan),
            "b": jnp.zeros((cout,), jnp.float32),
        }

    keys = iter(jax.random.split(key, 32))
    params = {
        "conv1": conv_p(next(keys), 64, 3, 3),
        "t": conv_p(next(keys), 3, 64, 3),
    }
    for r in range(1, 6):  # RCAB: conv3x3 -> ReLU -> conv3x3 -> CALayer(64, 16)
        params[f"R{r}"] = {
            "conv0": conv_p(next(keys), 64, 64, 3),
            "conv1": conv_p(next(keys), 64, 64, 3),
            "ca_down": conv_p(next(keys), 4, 64, 1),
            "ca_up": conv_p(next(keys), 64, 4, 1),
        }
    return params


# ------------------------------- forward -----------------------------------

class Args:
    scale = [2]
    float_scale = 0.5
    total_scale = 2.5


def h2a2sr_forward(x: jnp.ndarray, args=Args) -> jnp.ndarray:
    b, c, h, w = x.shape
    int_scale = math.floor(args.scale[0])
    res_scale = args.total_scale / int_scale
    out_h, out_w = int(h * res_scale), int(w * res_scale)   # matches int() in PyTorch

    # Hot path: padded 2-D DCT in one fused Pallas kernel over B*C planes.
    xf = x.reshape(b * c, h, w)                 # no wrapper-side dtype cast
    out = dct2d_pad_pallas(xf, out_h, out_w)

    # The lf/hf triu(diagonal=200) masking and the conv1/R1..R5/t/dct/idct
    # branch are computed in the PyTorch forward but never returned -> skipped.
    return out.reshape(b, c, out_h, out_w)


# --------------------------------- main -------------------------------------

if __name__ == "__main__":
    key = jax.random.PRNGKey(0)
    _params = init_params(jax.random.fold_in(key, 1))  # shape-faithful, unused for output

    b, c, h, w = 2, 3, 16, 16
    x = jax.random.normal(key, (b, c, h, w), dtype=jnp.float32)

    out = h2a2sr_forward(x)
    out = jax.block_until_ready(out)

    # Pure-JAX reference: padded orthonormal 2-D DCT-II.
    out_h = int(h * (Args.total_scale / math.floor(Args.scale[0])))
    out_w = int(w * (Args.total_scale / math.floor(Args.scale[0])))
    dh = dct_matrix(h)
    dwt = dct_matrix(w).T
    ref = jnp.einsum("ij,bcjk,kl->bcil", dh, x.astype(jnp.float32), dwt)
    ref = jnp.pad(ref, ((0, 0), (0, 0), (0, out_h - h), (0, out_w - w)))

    assert out.shape == (b, c, out_h, out_w), out.shape
    assert jnp.allclose(out, ref, atol=1e-4, rtol=1e-4), float(jnp.abs(out - ref).max())

    print("KERNEL_OK")
</pallas_src>

<mosaic_0001>
module attributes {stable_mosaic.version = 11 : i64} {
  func.func @_dct2d_pad_kernel(%arg0: i32, %arg1: memref<3x16x16xf32, #tpu.memory_space<vmem>>, %arg2: memref<20x16xf32, #tpu.memory_space<vmem>>, %arg3: memref<16x20xf32, #tpu.memory_space<vmem>>, %arg4: memref<3x20x20xf32, #tpu.memory_space<vmem>>) attributes {dimension_semantics = [#tpu.dimension_semantics<parallel>], iteration_bounds = array<i64: 2>, scalar_prefetch = 0 : i64, scratch_operands = 0 : i64, tpu.core_type = #tpu.core_type<tc>, window_params = [{transform_indices = @transform_0, window_bounds = array<i64: 3, 16, 16>}, {pipeline_mode = #tpu.pipeline_mode<synchronous>, transform_indices = @transform_1, window_bounds = array<i64: 20, 16>}, {pipeline_mode = #tpu.pipeline_mode<synchronous>, transform_indices = @transform_2, window_bounds = array<i64: 16, 20>}, {transform_indices = @transform_3, window_bounds = array<i64: 3, 20, 20>}]} {
    %c0 = arith.constant 0 : index
    %c0_0 = arith.constant 0 : index
    %c0_1 = arith.constant 0 : index
    %0 = vector.load %arg1[%c0, %c0_0, %c0_1] : memref<3x16x16xf32, #tpu.memory_space<vmem>>, vector<3x16x16xf32>
    %c0_2 = arith.constant 0 : index
    %c0_3 = arith.constant 0 : index
    %1 = vector.load %arg3[%c0_2, %c0_3] : memref<16x20xf32, #tpu.memory_space<vmem>>, vector<16x20xf32>
    %2 = vector.shape_cast %1 : vector<16x20xf32> to vector<1x16x20xf32>
    %3 = vector.broadcast %2 : vector<1x16x20xf32> to vector<3x16x20xf32>
    %c0_4 = arith.constant 0 : index
    %c0_5 = arith.constant 0 : index
    %4 = vector.load %arg2[%c0_4, %c0_5] : memref<20x16xf32, #tpu.memory_space<vmem>>, vector<20x16xf32>
    %5 = vector.shape_cast %4 : vector<20x16xf32> to vector<1x20x16xf32>
    %6 = vector.broadcast %5 : vector<1x20x16xf32> to vector<3x20x16xf32>
    "tpu.trace_start"() <{level = 10 : i32, message = "nhw,nwo->nho"}> : () -> ()
    %cst = arith.constant dense<0.000000e+00> : vector<3x16x20xf32>
    %7 = tpu.matmul %0, %3, %cst {dimension_numbers = #tpu.dot_dimension_numbers<[2], [1], [1], [2], [0, 0, 0, 1, 1, 2], [0], [0]>} : vector<3x16x16xf32>, vector<3x16x20xf32>, vector<3x16x20xf32> -> vector<3x16x20xf32>
    "tpu.trace_stop"() : () -> ()
    "tpu.trace_start"() <{level = 10 : i32, message = "nih,nho->nio"}> : () -> ()
    %cst_6 = arith.constant dense<0.000000e+00> : vector<3x20x20xf32>
    %8 = tpu.matmul %6, %7, %cst_6 {dimension_numbers = #tpu.dot_dimension_numbers<[2], [1], [1], [2], [0, 0, 0, 1, 1, 2], [0], [0]>} : vector<3x20x16xf32>, vector<3x16x20xf32>, vector<3x20x20xf32> -> vector<3x20x20xf32>
    "tpu.trace_stop"() : () -> ()
    %c0_7 = arith.constant 0 : index
    %c0_8 = arith.constant 0 : index
    %c0_9 = arith.constant 0 : index
    %9 = vector.load %arg4[%c0_7, %c0_8, %c0_9] : memref<3x20x20xf32, #tpu.memory_space<vmem>>, vector<3x20x20xf32>
    tpu.vector_store %arg4[%c0_7, %c0_8, %c0_9], %8 {strides = array<i32>} : memref<3x20x20xf32, #tpu.memory_space<vmem>>, vector<3x20x20xf32>,
    return
  }
  func.func @transform_0(%arg0: i32) -> (i32, i32, i32) {
    %c0_i32 = arith.constant 0 : i32
    %c0_i32_0 = arith.constant 0 : i32
    %c0_i32_1 = arith.constant 0 : i32
    return %arg0, %c0_i32, %c0_i32_0 : i32, i32, i32
  }
  func.func @transform_1(%arg0: i32) -> (i32, i32) {
    %c0_i32 = arith.constant 0 : i32
    %c0_i32_0 = arith.constant 0 : i32
    %c0_i32_1 = arith.constant 0 : i32
    return %c0_i32, %c0_i32_0 : i32, i32
  }
  func.func @transform_2(%arg0: i32) -> (i32, i32) {
    %c0_i32 = arith.constant 0 : i32
    %c0_i32_0 = arith.constant 0 : i32
    %c0_i32_1 = arith.constant 0 : i32
    return %c0_i32, %c0_i32_0 : i32, i32
  }
  func.func @transform_3(%arg0: i32) -> (i32, i32, i32) {
    %c0_i32 = arith.constant 0 : i32
    %c0_i32_0 = arith.constant 0 : i32
    %c0_i32_1 = arith.constant 0 : i32
    return %arg0, %c0_i32, %c0_i32_0 : i32, i32, i32
  }
}

</mosaic_0001>

<llo_original>
// kernel: tpu_custom_call.1
$region0: #{tpu_custom_call.1}
  #allocation0 [shape = 'u32[]', space=smem, size = 0x4, offset = 0x4, fixed_abs, tag = 'smem constant byte address 0x4 - core index']
  #allocation1 [shape = 'u32[144,128]{1,0:T(1,128)}', space=vmem, size = 0x12000, scoped, tag = 'internal scratch']
  %s0 = inlined_call_operand.hbm [shape: f32[6,16,16], index: 0, kind: input, shape index: {}]
  %s1 = inlined_call_operand.vmem [shape: f32[20,16], index: 1, kind: input, shape index: {}]
  %s2 = inlined_call_operand.vmem [shape: f32[16,20], index: 2, kind: input, shape index: {}]
  %s3 = inlined_call_operand.hbm [shape: f32[6,20,20], index: 3, kind: output, shape index: {}]
  %s4 = sld [smem:[#allocation0]]
  $region49: #{tpu_custom_call.1} parent=0
    _
  %s6 = ssub.s32 1, %s4
  %s7 = scalar_select 0, %s6, %s4
  $region1: #{tpu_custom_call.1} parent=0
    #allocation2 [shape = 'u8[49152]{0}', space=vmem, size = 0xc000, scoped, tag = 'input window, operand 0']
    #allocation3 [shape = 's32[2]{0}', space=sflag, size = 0x8, scoped, tag = 'scoped memory for tpu_custom_call.1']
    #allocation4 [shape = 's32[2]{0}', space=sflag, size = 0x8, scoped, tag = 'scoped memory for tpu_custom_call.1']
    #allocation5 [shape = 'u8[73728]{0}', space=vmem, size = 0x12000, scoped, tag = 'output window, operand 0']
    %8 = vsyncpa [#allocation3], 0
    %s9 = scalar_lea.sflag [#allocation3], 1
    %10 = vsyncpa %s9, 0
    %11 = vsyncpa [#allocation4], 0
    %s12 = scalar_lea.sflag [#allocation4], 1
    %13 = vsyncpa %s12, 0
    loop: start=0, step=1, limit=4
    $region2: #{tpu_custom_call.1} parent=1 // loop_pre_header
      _
    $region3: #{tpu_custom_call.1} parent=1 // loop_header
      %s15 = sphi 0, %s19
      %p16 = scmp.ge.s32.totalorder %s15, 4
      %s25 = sphi 0, %s27
      %s28 = sphi 0, %s25
      %s29 = sphi 0, %s28
      %s45 = sphi 0, %s29
      %s49 = sphi 0, %s49
      %s51 = sphi 0, %s49
      %s52 = sphi 0, %s51
      %s66 = sphi 0, %s52
      %s70 = sphi 0, %s70
      %s72 = sphi 0, %s70
      %s73 = sphi 0, %s72
      %s87 = sphi 0, %s73
      %s93 = sphi 0, %s95
      %s96 = sphi 0, %s93
      %s97 = sphi 0, %s96
      %s113 = sphi 0, %s97
    $region4: #{tpu_custom_call.1} parent=1 // loop_header_branch
      %18 = sbr.rel (%p16) target = $region8
    $region5: #{tpu_custom_call.1} parent=1 // loop_body
      %s20 = ssub.s32 %s15, 1
      %s21 = ssub.s32 %s15, 2
      %s22 = sadd.s32 %s15, 1
      %s23 = ssub.s32 %s15, %s22
      %p24 = scmp.eq.s32.totalorder %s23, 0
      %s26 = sadd.s32 %s25, 1
      %s27 = scalar_select %p24, %s25, %s26
      %p30 = pneg %p24
      %p31 = scmp.eq.s32.totalorder %s15, 1
      %p32 = por %p30, %p31
      %p33 = scmp.ne.s32.totalorder %s25, %s28
      %p34 = scmp.eq.s32.totalorder %s15, 0
      %p35 = por %p33, %p34
      %p36 = scmp.ne.s32.totalorder %s25, %s28
      %p37 = scmp.eq.s32.totalorder %s20, 1
      %p38 = por %p36, %p37
      %p39 = scmp.ne.s32.totalorder %s28, %s29
      %p40 = scmp.eq.s32.totalorder %s20, 0
      %p41 = por %p39, %p40
      %p42 = scmp.ne.s32.totalorder %s28, %s29
      %p43 = scmp.eq.s32.totalorder %s21, 1
      %p44 = por %p42, %p43
      %p46 = scmp.ne.s32.totalorder %s29, %s45
      %p47 = scmp.eq.s32.totalorder %s21, 0
      %p48 = por %p46, %p47
      %s50 = sadd.s32 %s49, 1
      %p53 = scmp.eq.s32.totalorder %s15, 1
      %p54 = scmp.ne.s32.totalorder %s49, %s51
      %p55 = scmp.eq.s32.totalorder %s15, 0
      %p56 = por %p54, %p55
      %p57 = scmp.ne.s32.totalorder %s49, %s51
      %p58 = scmp.eq.s32.totalorder %s20, 1
      %p59 = por %p57, %p58
      %p60 = scmp.ne.s32.totalorder %s51, %s52
      %p61 = scmp.eq.s32.totalorder %s20, 0
      %p62 = por %p60, %p61
      %p63 = scmp.ne.s32.totalorder %s51, %s52
      %p64 = scmp.eq.s32.totalorder %s21, 1
      %p65 = por %p63, %p64
      %p67 = scmp.ne.s32.totalorder %s52, %s66
      %p68 = scmp.eq.s32.totalorder %s21, 0
      %p69 = por %p67, %p68
      %s71 = sadd.s32 %s70, 1
      %p74 = scmp.eq.s32.totalorder %s15, 1
      %p75 = scmp.ne.s32.totalorder %s70, %s72
      %p76 = scmp.eq.s32.totalorder %s15, 0
      %p77 = por %p75, %p76
      %p78 = scmp.ne.s32.totalorder %s70, %s72
      %p79 = scmp.eq.s32.totalorder %s20, 1
      %p80 = por %p78, %p79
      %p81 = scmp.ne.s32.totalorder %s72, %s73
      %p82 = scmp.eq.s32.totalorder %s20, 0
      %p83 = por %p81, %p82
      %p84 = scmp.ne.s32.totalorder %s72, %s73
      %p85 = scmp.eq.s32.totalorder %s21, 1
      %p86 = por %p84, %p85
      %p88 = scmp.ne.s32.totalorder %s73, %s87
      %p89 = scmp.eq.s32.totalorder %s21, 0
      %p90 = por %p88, %p89
      %s91 = ssub.s32 %s15, %s22
      %p92 = scmp.eq.s32.totalorder %s91, 0
      %s94 = sadd.s32 %s93, 1
      %s95 = scalar_select %p92, %s93, %s94
      %p98 = pneg %p92
      %p99 = scmp.eq.s32.totalorder %s15, 1
      %p100 = por %p98, %p99
      %p101 = scmp.ne.s32.totalorder %s93, %s96
      %p102 = scmp.eq.s32.totalorder %s15, 0
      %p103 = por %p101, %p102
      %p104 = scmp.ne.s32.totalorder %s93, %s96
      %p105 = scmp.eq.s32.totalorder %s20, 1
      %p106 = por %p104, %p105
      %p107 = scmp.ne.s32.totalorder %s96, %s97
      %p108 = scmp.eq.s32.totalorder %s20, 0
      %p109 = por %p107, %p108
      %p110 = scmp.ne.s32.totalorder %s96, %s97
      %p111 = scmp.eq.s32.totalorder %s21, 1
      %p112 = por %p110, %p111
      %p114 = scmp.ne.s32.totalorder %s97, %s113
      %p115 = scmp.eq.s32.totalorder %s21, 0
      %p116 = por %p114, %p115
      %p117 = scmp.le.s32.totalorder 1, %s15
      %p118 = scmp.lt.s32.totalorder %s15, 3
      %p119 = pnand %p117, %p118
      %p120 = pneg %p119
      // Predicated region
      $region9: #{tpu_custom_call.1} parent=5 // pred_check
        _
      $region10: #{tpu_custom_call.1} parent=5 // pred_check_branch
        %122 = sbr.rel (%p119) target = $region12
      $region11: #{tpu_custom_call.1} parent=5 // pred_region
        %s123 = ssub.s32 %s15, 1
        // Predicated region
        $region13: #{tpu_custom_call.1} parent=11 // pred_check
          %p124 = pneg %p62
        $region14: #{tpu_custom_call.1} parent=11 // pred_check_branch
          %126 = sbr.rel (%p124) target = $region16
        $region15: #{tpu_custom_call.1} parent=11 // pred_region
          _
        $region16: #{tpu_custom_call.1} parent=11 // pred_fallthru
          _
        // Predicated region
        $region17: #{tpu_custom_call.1} parent=11 // pred_check
          %p127 = pneg %p83
        $region18: #{tpu_custom_call.1} parent=11 // pred_check_branch
          %129 = sbr.rel (%p127) target = $region20
        $region19: #{tpu_custom_call.1} parent=11 // pred_region
          _
        $region20: #{tpu_custom_call.1} parent=11 // pred_fallthru
          _
      $region12: #{tpu_custom_call.1} parent=5 // pred_fallthru
        _
      %p130 = scmp.lt.s32.totalorder %s15, 2
      // Predicated region
      $region21: #{tpu_custom_call.1} parent=5 // pred_check
        %p131 = pneg %p130
      $region22: #{tpu_custom_call.1} parent=5 // pred_check_branch
        %133 = sbr.rel (%p131) target = $region24
      $region23: #{tpu_custom_call.1} parent=5 // pred_region
        // Predicated region
        $region25: #{tpu_custom_call.1} parent=23 // pred_check
          %p134 = pneg %p35
        $region26: #{tpu_custom_call.1} parent=23 // pred_check_branch
          %136 = sbr.rel (%p134) target = $region28
        $region27: #{tpu_custom_call.1} parent=23 // pred_region
          %s137 = sand.u32 %s25, 1
          %s138 = scalar_lea.sflag [#allocation3], %s137
          %s139 = sand.u32 %s25, 1
          %s140 = smul.addr %s139, 48
          %s141 = scalar_lea.vmem [#allocation2], %s140
          %s142 = smul.u32 3, %s15
          %s144 = ssub.s32 768, 768
          %145 = vsyncadd %s138, %s144
          %s146 = smul.addr %s142, 2
          %s147 = smul.addr %s146, 128
          %s148 = scalar_lea.hbm %s0, %s147
          %s149 = sshll.u32 %s141, 4
          %s150 = int_to_ptr.vmem [resolvable:$true] %s149
          %155 = dma.hbm_to_vmem [thread:$0]  %s148, 768, %s150, %s138, 128, 128, 8
        $region28: #{tpu_custom_call.1} parent=23 // pred_fallthru
          _
      $region24: #{tpu_custom_call.1} parent=5 // pred_fallthru
        _
      %p156 = scmp.le.s32.totalorder 1, %s15
      %p157 = scmp.lt.s32.totalorder %s15, 3
      %p158 = pnand %p156, %p157
      %p159 = pneg %p158
      // Predicated region
      $region29: #{tpu_custom_call.1} parent=5 // pred_check
        _
      $region30: #{tpu_custom_call.1} parent=5 // pred_check_branch
        %161 = sbr.rel (%p158) target = $region32
      $region31: #{tpu_custom_call.1} parent=5 // pred_region
        %s162 = ssub.s32 %s15, 1
        %s163 = sand.u32 %s28, 1
        %s164 = scalar_lea.sflag [#allocation3], %s163
        %s165 = sand.u32 %s28, 1
        %s166 = smul.addr %s165, 48
        %s167 = scalar_lea.vmem [#allocation2], %s166
        // Predicated region
        $region33: #{tpu_custom_call.1} parent=31 // pred_check
          %p168 = pneg %p41
        $region34: #{tpu_custom_call.1} parent=31 // pred_check_branch
          %170 = sbr.rel (%p168) target = $region36
        $region35: #{tpu_custom_call.1} parent=31 // pred_region
          %171 = dma.done %s164, 768
        $region36: #{tpu_custom_call.1} parent=31 // pred_fallthru
          _
        %s172 = sand.u32 %s28, 1
        %s173 = scalar_lea.sflag [#allocation3], %s172
        %s174 = sand.u32 %s28, 1
        %s175 = smul.addr %s174, 48
        %s176 = scalar_lea.vmem [#allocation2], %s175
        %p177 = pneg %p41
        %p178 = pneg %p38
        %p179 = pneg %p62
        %p180 = pneg %p59
        %p181 = pneg %p83
        %p182 = pneg %p80
        %p183 = pneg %p109
        %p184 = pneg %p106
        %s185 = sand.u32 %s96, 1
        %s186 = scalar_lea.sflag [#allocation4], %s185
        %s187 = sand.u32 %s96, 1
        %s188 = smul.addr %s187, 72
        %s189 = scalar_lea.vmem [#allocation5], %s188
        %s190 = smul.u32 3, %s20
        %s191 = smul.u32 3, %s20
        %v192 = vld [vmem:[%s167] sm:$0xff]
        %v193 = vld [vmem:[%s167 + $0x8] sm:$0xff]
        %v194 = vld [vmem:[%s167 + $0x10] sm:$0xff]
        %v195 = vld [vmem:[%s167 + $0x18] sm:$0xff]
        %v196 = vld [vmem:[%s167 + $0x20] sm:$0xff]
        %v197 = vld [vmem:[%s167 + $0x28] sm:$0xff]
        %v198 = vld [vmem:[%s2] sm:$0xff]
        %v199 = vld [vmem:[%s2 + $0x8] sm:$0xff]
        %v200 = vld [vmem:[%s1] sm:$0xff]
        %v201 = vld [vmem:[%s1 + $0x8] sm:$0xff]
        %v202 = vld [vmem:[%s1 + $0x10] sm:$0xf]
        %vm203 = vcmask 130048
        %v205 = vsel %vm203, %v192, 0
        %v208 = vsel %vm203, %v193, 0
        %210 = vmatprep.subr.mxu0 0.0
        %211 = vmatpush1.msra.mxu0 %v198
        %212 = vmatprep.subr.mxu0 0.0
        %213 = vmatpush1.msra.mxu0 %v199
        %214 = vmatprep.subr.mxu0 0.0
        %215 = vmatpush1.msra.mxu0 0.0
        %216 = vmatprep.subr.mxu0 0.0
        %217 = vmatpush1.msra.mxu0 0.0
        %218 = vmatprep.subr.mxu0 0.0
        %219 = vmatpush1.msra.mxu0 0.0
        %220 = vmatprep.subr.mxu0 0.0
        %221 = vmatpush1.msra.mxu0 0.0
        %222 = vmatprep.subr.mxu0 0.0
        %223 = vmatpush1.msra.mxu0 0.0
        %224 = vmatprep.subr.mxu0 0.0
        %225 = vmatpush1.msra.mxu0 0.0
        %226 = vmatprep.subr.mxu0 0.0
        %227 = vmatpush1.msra.mxu0 0.0
        %228 = vmatprep.subr.mxu0 0.0
        %229 = vmatpush1.msra.mxu0 0.0
        %230 = vmatprep.subr.mxu0 0.0
        %231 = vmatpush1.msra.mxu0 0.0
        %232 = vmatprep.subr.mxu0 0.0
        %233 = vmatpush1.msra.mxu0 0.0
        %234 = vmatprep.subr.mxu0 0.0
        %235 = vmatpush1.msra.mxu0 0.0
        %236 = vmatprep.subr.mxu0 0.0
        %237 = vmatpush1.msra.mxu0 0.0
        %238 = vmatprep.subr.mxu0 0.0
        %239 = vmatpush1.msra.mxu0 0.0
        %240 = vmatprep.subr.mxu0 0.0
        %241 = vmatpush1.msra.mxu0 0.0
        %242 = vmatprep.subr.mxu0 0.0
        %243 = vmatpush1.msra.mxu0 0.0
        %244 = vmatprep.subr.mxu0 0.0
        %245 = vmatpush1.msra.mxu0 0.0
        %246 = vmatprep.subr.mxu0 0.0
        %247 = vmatpush1.msra.mxu0 0.0
        %248 = vmatprep.subr.mxu0 0.0
        %249 = vmatpush1.msra.mxu0 0.0
        %250 = vmatprep.subr.mxu0 0.0
        %251 = vmatpush1.msra.mxu0 0.0
        %252 = vmatprep.subr.mxu0 0.0
        %253 = vmatpush1.msra.mxu0 0.0
        %254 = vmatprep.subr.mxu0 0.0
        %255 = vmatpush1.msra.mxu0 0.0
        %256 = vmatprep.subr.mxu0 0.0
        %257 = vmatpush1.msra.mxu0 0.0
        %258 = vmatprep.subr.mxu0 0.0
        %259 = vmatpush1.msra.mxu0 0.0
        %260 = vmatprep.subr.mxu0 0.0
        %261 = vmatpush1.msra.mxu0 0.0
        %262 = vmatprep.subr.mxu0 0.0
        %263 = vmatpush1.msra.mxu0 0.0
        %264 = vmatprep.subr.mxu0 0.0
        %265 = vmatpush1.msra.mxu0 0.0
        %266 = vmatprep.subr.mxu0 0.0
        %267 = vmatpush1.msra.mxu0 0.0
        %268 = vmatprep.subr.mxu0 0.0
        %269 = vmatpush1.msra.mxu0 0.0
        %270 = vmatprep.subr.mxu0 0.0
        %271 = vmatpush1.msra.mxu0 0.0
        %272 = vmatprep.subr.mxu0 0.0
        %273 = vmatpush1.msra.mxu0 0.0
        %274 = vmatprep.mubr.f32.mxu0 0.0
        %275 = vmatmul.mubr.f32.gmra.mrb[0].mxu0 %v205
        %v276 = vpop.f32.mrb[0].mxu0
        %v277 = vadd.f32 0.0, %v276
        %v278 = vpop.f32.mrb[0].mxu0
        %279 = vmatprep.mubr.f32.mxu0 0.0
        %280 = vmatmul.mubr.f32.gmra.mrb[0].mxu0 %v208
        %v281 = vpop.f32.mrb[0].mxu0
        %v282 = vadd.f32 0.0, %v281
        %v283 = vpop.f32.mrb[0].mxu0
        %284 = vdwg.mxu0
        %v286 = vsel %vm203, %v194, 0
        %v289 = vsel %vm203, %v195, 0
        %291 = vmatprep.subr.mxu0 0.0
        %292 = vmatpush1.msra.mxu0 %v198
        %293 = vmatprep.subr.mxu0 0.0
        %294 = vmatpush1.msra.mxu0 %v199
        %295 = vmatprep.subr.mxu0 0.0
        %296 = vmatpush1.msra.mxu0 0.0
        %297 = vmatprep.subr.mxu0 0.0
        %298 = vmatpush1.msra.mxu0 0.0
        %299 = vmatprep.subr.mxu0 0.0
        %300 = vmatpush1.msra.mxu0 0.0
        %301 = vmatprep.subr.mxu0 0.0
        %302 = vmatpush1.msra.mxu0 0.0
        %303 = vmatprep.subr.mxu0 0.0
        %304 = vmatpush1.msra.mxu0 0.0
        %305 = vmatprep.subr.mxu0 0.0
        %306 = vmatpush1.msra.mxu0 0.0
        %307 = vmatprep.subr.mxu0 0.0
        %308 = vmatpush1.msra.mxu0 0.0
        %309 = vmatprep.subr.mxu0 0.0
        %310 = vmatpush1.msra.mxu0 0.0
        %311 = vmatprep.subr.mxu0 0.0
        %312 = vmatpush1.msra.mxu0 0.0
        %313 = vmatprep.subr.mxu0 0.0
        %314 = vmatpush1.msra.mxu0 0.0
        %315 = vmatprep.subr.mxu0 0.0
        %316 = vmatpush1.msra.mxu0 0.0
        %317 = vmatprep.subr.mxu0 0.0
        %318 = vmatpush1.msra.mxu0 0.0
        %319 = vmatprep.subr.mxu0 0.0
        %320 = vmatpush1.msra.mxu0 0.0
        %321 = vmatprep.subr.mxu0 0.0
        %322 = vmatpush1.msra.mxu0 0.0
        %323 = vmatprep.subr.mxu0 0.0
        %324 = vmatpush1.msra.mxu0 0.0
        %325 = vmatprep.subr.mxu0 0.0
        %326 = vmatpush1.msra.mxu0 0.0
        %327 = vmatprep.subr.mxu0 0.0
        %328 = vmatpush1.msra.mxu0 0.0
        %329 = vmatprep.subr.mxu0 0.0
        %330 = vmatpush1.msra.mxu0 0.0
        %331 = vmatprep.subr.mxu0 0.0
        %332 = vmatpush1.msra.mxu0 0.0
        %333 = vmatprep.subr.mxu0 0.0
        %334 = vmatpush1.msra.mxu0 0.0
        %335 = vmatprep.subr.mxu0 0.0
        %336 = vmatpush1.msra.mxu0 0.0
        %337 = vmatprep.subr.mxu0 0.0
        %338 = vmatpush1.msra.mxu0 0.0
        %339 = vmatprep.subr.mxu0 0.0
        %340 = vmatpush1.msra.mxu0 0.0
        %341 = vmatprep.subr.mxu0 0.0
        %342 = vmatpush1.msra.mxu0 0.0
        %343 = vmatprep.subr.mxu0 0.0
        %344 = vmatpush1.msra.mxu0 0.0
        %345 = vmatprep.subr.mxu0 0.0
        %346 = vmatpush1.msra.mxu0 0.0
        %347 = vmatprep.subr.mxu0 0.0
        %348 = vmatpush1.msra.mxu0 0.0
        %349 = vmatprep.subr.mxu0 0.0
        %350 = vmatpush1.msra.mxu0 0.0
        %351 = vmatprep.subr.mxu0 0.0
        %352 = vmatpush1.msra.mxu0 0.0
        %353 = vmatprep.subr.mxu0 0.0
        %354 = vmatpush1.msra.mxu0 0.0
        %355 = vmatprep.mubr.f32.mxu0 0.0
        %356 = vmatmul.mubr.f32.gmra.mrb[0].mxu0 %v286
        %v357 = vpop.f32.mrb[0].mxu0
        %v358 = vadd.f32 0.0, %v357
        %v359 = vpop.f32.mrb[0].mxu0
        %360 = vmatprep.mubr.f32.mxu0 0.0
        %361 = vmatmul.mubr.f32.gmra.mrb[0].mxu0 %v289
        %v362 = vpop.f32.mrb[0].mxu0
        %v363 = vadd.f32 0.0, %v362
        %v364 = vpop.f32.mrb[0].mxu0
        %365 = vdwg.mxu0
        %v367 = vsel %vm203, %v196, 0
        %v370 = vsel %vm203, %v197, 0
        %372 = vmatprep.subr.mxu0 0.0
        %373 = vmatpush1.msra.mxu0 %v198
        %374 = vmatprep.subr.mxu0 0.0
        %375 = vmatpush1.msra.mxu0 %v199
        %376 = vmatprep.subr.mxu0 0.0
        %377 = vmatpush1.msra.mxu0 0.0
        %378 = vmatprep.subr.mxu0 0.0
        %379 = vmatpush1.msra.mxu0 0.0
        %380 = vmatprep.subr.mxu0 0.0
        %381 = vmatpush1.msra.mxu0 0.0
        %382 = vmatprep.subr.mxu0 0.0
        %383 = vmatpush1.msra.mxu0 0.0
        %384 = vmatprep.subr.mxu0 0.0
        %385 = vmatpush1.msra.mxu0 0.0
        %386 = vmatprep.subr.mxu0 0.0
        %387 = vmatpush1.msra.mxu0 0.0
        %388 = vmatprep.subr.mxu0 0.0
        %389 = vmatpush1.msra.mxu0 0.0
        %390 = vmatprep.subr.mxu0 0.0
        %391 = vmatpush1.msra.mxu0 0.0
        %392 = vmatprep.subr.mxu0 0.0
        %393 = vmatpush1.msra.mxu0 0.0
        %394 = vmatprep.subr.mxu0 0.0
        %395 = vmatpush1.msra.mxu0 0.0
        %396 = vmatprep.subr.mxu0 0.0
        %397 = vmatpush1.msra.mxu0 0.0
        %398 = vmatprep.subr.mxu0 0.0
        %399 = vmatpush1.msra.mxu0 0.0
        %400 = vmatprep.subr.mxu0 0.0
        %401 = vmatpush1.msra.mxu0 0.0
        %402 = vmatprep.subr.mxu0 0.0
        %403 = vmatpush1.msra.mxu0 0.0
        %404 = vmatprep.subr.mxu0 0.0
        %405 = vmatpush1.msra.mxu0 0.0
        %406 = vmatprep.subr.mxu0 0.0
        %407 = vmatpush1.msra.mxu0 0.0
        %408 = vmatprep.subr.mxu0 0.0
        %409 = vmatpush1.msra.mxu0 0.0
        %410 = vmatprep.subr.mxu0 0.0
        %411 = vmatpush1.msra.mxu0 0.0
        %412 = vmatprep.subr.mxu0 0.0
        %413 = vmatpush1.msra.mxu0 0.0
        %414 = vmatprep.subr.mxu0 0.0
        %415 = vmatpush1.msra.mxu0 0.0
        %416 = vmatprep.subr.mxu0 0.0
        %417 = vmatpush1.msra.mxu0 0.0
        %418 = vmatprep.subr.mxu0 0.0
        %419 = vmatpush1.msra.mxu0 0.0
        %420 = vmatprep.subr.mxu0 0.0
        %421 = vmatpush1.msra.mxu0 0.0
        %422 = vmatprep.subr.mxu0 0.0
        %423 = vmatpush1.msra.mxu0 0.0
        %424 = vmatprep.subr.mxu0 0.0
        %425 = vmatpush1.msra.mxu0 0.0
        %426 = vmatprep.subr.mxu0 0.0
        %427 = vmatpush1.msra.mxu0 0.0
        %428 = vmatprep.subr.mxu0 0.0
        %429 = vmatpush1.msra.mxu0 0.0
        %430 = vmatprep.subr.mxu0 0.0
        %431 = vmatpush1.msra.mxu0 0.0
        %432 = vmatprep.subr.mxu0 0.0
        %433 = vmatpush1.msra.mxu0 0.0
        %434 = vmatprep.subr.mxu0 0.0
        %435 = vmatpush1.msra.mxu0 0.0
        %436 = vmatprep.mubr.f32.mxu0 0.0
        %437 = vmatmul.mubr.f32.gmra.mrb[0].mxu0 %v367
        %v438 = vpop.f32.mrb[0].mxu0
        %v439 = vadd.f32 0.0, %v438
        %v440 = vpop.f32.mrb[0].mxu0
        %441 = vmatprep.mubr.f32.mxu0 0.0
        %442 = vmatmul.mubr.f32.gmra.mrb[0].mxu0 %v370
        %v443 = vpop.f32.mrb[0].mxu0
        %v444 = vadd.f32 0.0, %v443
        %v445 = vpop.f32.mrb[0].mxu0
        %446 = vdwg.mxu0
        %v448 = vsel %vm203, %v200, 0
        %v451 = vsel %vm203, %v201, 0
        %v454 = vsel %vm203, %v202, 0
        %456 = vmatprep.subr.mxu0 0.0
        %457 = vmatpush1.msra.mxu0 %v277
        %458 = vmatprep.subr.mxu0 0.0
        %459 = vmatpush1.msra.mxu0 %v282
        %460 = vmatprep.subr.mxu0 0.0
        %461 = vmatpush1.msra.mxu0 0.0
        %462 = vmatprep.subr.mxu0 0.0
        %463 = vmatpush1.msra.mxu0 0.0
        %464 = vmatprep.subr.mxu0 0.0
        %465 = vmatpush1.msra.mxu0 0.0
        %466 = vmatprep.subr.mxu0 0.0
        %467 = vmatpush1.msra.mxu0 0.0
        %468 = vmatprep.subr.mxu0 0.0
        %469 = vmatpush1.msra.mxu0 0.0
        %470 = vmatprep.subr.mxu0 0.0
        %471 = vmatpush1.msra.mxu0 0.0
        %472 = vmatprep.subr.mxu0 0.0
        %473 = vmatpush1.msra.mxu0 0.0
        %474 = vmatprep.subr.mxu0 0.0
        %475 = vmatpush1.msra.mxu0 0.0
        %476 = vmatprep.subr.mxu0 0.0
        %477 = vmatpush1.msra.mxu0 0.0
        %478 = vmatprep.subr.mxu0 0.0
        %479 = vmatpush1.msra.mxu0 0.0
        %480 = vmatprep.subr.mxu0 0.0
        %481 = vmatpush1.msra.mxu0 0.0
        %482 = vmatprep.subr.mxu0 0.0
        %483 = vmatpush1.msra.mxu0 0.0
        %484 = vmatprep.subr.mxu0 0.0
        %485 = vmatpush1.msra.mxu0 0.0
        %486 = vmatprep.subr.mxu0 0.0
        %487 = vmatpush1.msra.mxu0 0.0
        %488 = vmatprep.subr.mxu0 0.0
        %489 = vmatpush1.msra.mxu0 0.0
        %490 = vmatprep.subr.mxu0 0.0
        %491 = vmatpush1.msra.mxu0 0.0
        %492 = vmatprep.subr.mxu0 0.0
        %493 = vmatpush1.msra.mxu0 0.0
        %494 = vmatprep.subr.mxu0 0.0
        %495 = vmatpush1.msra.mxu0 0.0
        %496 = vmatprep.subr.mxu0 0.0
        %497 = vmatpush1.msra.mxu0 0.0
        %498 = vmatprep.subr.mxu0 0.0
        %499 = vmatpush1.msra.mxu0 0.0
        %500 = vmatprep.subr.mxu0 0.0
        %501 = vmatpush1.msra.mxu0 0.0
        %502 = vmatprep.subr.mxu0 0.0
        %503 = vmatpush1.msra.mxu0 0.0
        %504 = vmatprep.subr.mxu0 0.0
        %505 = vmatpush1.msra.mxu0 0.0
        %506 = vmatprep.subr.mxu0 0.0
        %507 = vmatpush1.msra.mxu0 0.0
        %508 = vmatprep.subr.mxu0 0.0
        %509 = vmatpush1.msra.mxu0 0.0
        %510 = vmatprep.subr.mxu0 0.0
        %511 = vmatpush1.msra.mxu0 0.0
        %512 = vmatprep.subr.mxu0 0.0
        %513 = vmatpush1.msra.mxu0 0.0
        %514 = vmatprep.subr.mxu0 0.0
        %515 = vmatpush1.msra.mxu0 0.0
        %516 = vmatprep.subr.mxu0 0.0
        %517 = vmatpush1.msra.mxu0 0.0
        %518 = vmatprep.subr.mxu0 0.0
        %519 = vmatpush1.msra.mxu0 0.0
        %520 = vmatprep.mubr.f32.mxu0 0.0
        %521 = vmatmul.mubr.f32.gmra.mrb[0].mxu0 %v448
        %v522 = vpop.f32.mrb[0].mxu0
        %v523 = vadd.f32 0.0, %v522
        %v524 = vpop.f32.mrb[0].mxu0
        %525 = vmatprep.mubr.f32.mxu0 0.0
        %526 = vmatmul.mubr.f32.gmra.mrb[0].mxu0 %v451
        %v527 = vpop.f32.mrb[0].mxu0
        %v528 = vadd.f32 0.0, %v527
        %v529 = vpop.f32.mrb[0].mxu0
        %530 = vmatprep.mubr.f32.mxu0 0.0
        %531 = vmatmul.mubr.f32.gmra.mrb[0].mxu0 %v454
        %v532 = vpop.f32.mrb[0].mxu0
        %v533 = vadd.f32 0.0, %v532
        %v534 = vpop.f32.mrb[0].mxu0
        %535 = vdwg.mxu0
        %536 = vmatprep.subr.mxu0 0.0
        %537 = vmatpush1.msra.mxu0 %v358
        %538 = vmatprep.subr.mxu0 0.0
        %539 = vmatpush1.msra.mxu0 %v363
        %540 = vmatprep.subr.mxu0 0.0
        %541 = vmatpush1.msra.mxu0 0.0
        %542 = vmatprep.subr.mxu0 0.0
        %543 = vmatpush1.msra.mxu0 0.0
        %544 = vmatprep.subr.mxu0 0.0
        %545 = vmatpush1.msra.mxu0 0.0
        %546 = vmatprep.subr.mxu0 0.0
        %547 = vmatpush1.msra.mxu0 0.0
        %548 = vmatprep.subr.mxu0 0.0
        %549 = vmatpush1.msra.mxu0 0.0
        %550 = vmatprep.subr.mxu0 0.0
        %551 = vmatpush1.msra.mxu0 0.0
        %552 = vmatprep.subr.mxu0 0.0
        %553 = vmatpush1.msra.mxu0 0.0
        %554 = vmatprep.subr.mxu0 0.0
        %555 = vmatpush1.msra.mxu0 0.0
        %556 = vmatprep.subr.mxu0 0.0
        %557 = vmatpush1.msra.mxu0 0.0
        %558 = vmatprep.subr.mxu0 0.0
        %559 = vmatpush1.msra.mxu0 0.0
        %560 = vmatprep.subr.mxu0 0.0
        %561 = vmatpush1.msra.mxu0 0.0
        %562 = vmatprep.subr.mxu0 0.0
        %563 = vmatpush1.msra.mxu0 0.0
        %564 = vmatprep.subr.mxu0 0.0
        %565 = vmatpush1.msra.mxu0 0.0
        %566 = vmatprep.subr.mxu0 0.0
        %567 = vmatpush1.msra.mxu0 0.0
        %568 = vmatprep.subr.mxu0 0.0
        %569 = vmatpush1.msra.mxu0 0.0
        %570 = vmatprep.subr.mxu0 0.0
        %571 = vmatpush1.msra.mxu0 0.0
        %572 = vmatprep.subr.mxu0 0.0
        %573 = vmatpush1.msra.mxu0 0.0
        %574 = vmatprep.subr.mxu0 0.0
        %575 = vmatpush1.msra.mxu0 0.0
        %576 = vmatprep.subr.mxu0 0.0
        %577 = vmatpush1.msra.mxu0 0.0
        %578 = vmatprep.subr.mxu0 0.0
        %579 = vmatpush1.msra.mxu0 0.0
        %580 = vmatprep.subr.mxu0 0.0
        %581 = vmatpush1.msra.mxu0 0.0
        %582 = vmatprep.subr.mxu0 0.0
        %583 = vmatpush1.msra.mxu0 0.0
        %584 = vmatprep.subr.mxu0 0.0
        %585 = vmatpush1.msra.mxu0 0.0
        %586 = vmatprep.subr.mxu0 0.0
        %587 = vmatpush1.msra.mxu0 0.0
        %588 = vmatprep.subr.mxu0 0.0
        %589 = vmatpush1.msra.mxu0 0.0
        %590 = vmatprep.subr.mxu0 0.0
        %591 = vmatpush1.msra.mxu0 0.0
        %592 = vmatprep.subr.mxu0 0.0
        %593 = vmatpush1.msra.mxu0 0.0
        %594 = vmatprep.subr.mxu0 0.0
        %595 = vmatpush1.msra.mxu0 0.0
        %596 = vmatprep.subr.mxu0 0.0
        %597 = vmatpush1.msra.mxu0 0.0
        %598 = vmatprep.subr.mxu0 0.0
        %599 = vmatpush1.msra.mxu0 0.0
        %600 = vmatprep.mubr.f32.mxu0 0.0
        %601 = vmatmul.mubr.f32.gmra.mrb[0].mxu0 %v448
        %v602 = vpop.f32.mrb[0].mxu0
        %v603 = vadd.f32 0.0, %v602
        %v604 = vpop.f32.mrb[0].mxu0
        %605 = vmatprep.mubr.f32.mxu0 0.0
        %606 = vmatmul.mubr.f32.gmra.mrb[0].mxu0 %v451
        %v607 = vpop.f32.mrb[0].mxu0
        %v608 = vadd.f32 0.0, %v607
        %v609 = vpop.f32.mrb[0].mxu0
        %610 = vmatprep.mubr.f32.mxu0 0.0
        %611 = vmatmul.mubr.f32.gmra.mrb[0].mxu0 %v454
        %v612 = vpop.f32.mrb[0].mxu0
        %v613 = vadd.f32 0.0, %v612
        %v614 = vpop.f32.mrb[0].mxu0
        %615 = vdwg.mxu0
        %616 = vmatprep.subr.mxu0 0.0
        %617 = vmatpush1.msra.mxu0 %v439
        %618 = vmatprep.subr.mxu0 0.0
        %619 = vmatpush1.msra.mxu0 %v444
        %620 = vmatprep.subr.mxu0 0.0
        %621 = vmatpush1.msra.mxu0 0.0
        %622 = vmatprep.subr.mxu0 0.0
        %623 = vmatpush1.msra.mxu0 0.0
        %624 = vmatprep.subr.mxu0 0.0
        %625 = vmatpush1.msra.mxu0 0.0
        %626 = vmatprep.subr.mxu0 0.0
        %627 = vmatpush1.msra.mxu0 0.0
        %628 = vmatprep.subr.mxu0 0.0
        %629 = vmatpush1.msra.mxu0 0.0
        %630 = vmatprep.subr.mxu0 0.0
        %631 = vmatpush1.msra.mxu0 0.0
        %632 = vmatprep.subr.mxu0 0.0
        %633 = vmatpush1.msra.mxu0 0.0
        %634 = vmatprep.subr.mxu0 0.0
        %635 = vmatpush1.msra.mxu0 0.0
        %636 = vmatprep.subr.mxu0 0.0
        %637 = vmatpush1.msra.mxu0 0.0
        %638 = vmatprep.subr.mxu0 0.0
        %639 = vmatpush1.msra.mxu0 0.0
        %640 = vmatprep.subr.mxu0 0.0
        %641 = vmatpush1.msra.mxu0 0.0
        %642 = vmatprep.subr.mxu0 0.0
        %643 = vmatpush1.msra.mxu0 0.0
        %644 = vmatprep.subr.mxu0 0.0
        %645 = vmatpush1.msra.mxu0 0.0
        %646 = vmatprep.subr.mxu0 0.0
        %647 = vmatpush1.msra.mxu0 0.0
        %648 = vmatprep.subr.mxu0 0.0
        %649 = vmatpush1.msra.mxu0 0.0
        %650 = vmatprep.subr.mxu0 0.0
        %651 = vmatpush1.msra.mxu0 0.0
        %652 = vmatprep.subr.mxu0 0.0
        %653 = vmatpush1.msra.mxu0 0.0
        %654 = vmatprep.subr.mxu0 0.0
        %655 = vmatpush1.msra.mxu0 0.0
        %656 = vmatprep.subr.mxu0 0.0
        %657 = vmatpush1.msra.mxu0 0.0
        %658 = vmatprep.subr.mxu0 0.0
        %659 = vmatpush1.msra.mxu0 0.0
        %660 = vmatprep.subr.mxu0 0.0
        %661 = vmatpush1.msra.mxu0 0.0
        %662 = vmatprep.subr.mxu0 0.0
        %663 = vmatpush1.msra.mxu0 0.0
        %664 = vmatprep.subr.mxu0 0.0
        %665 = vmatpush1.msra.mxu0 0.0
        %666 = vmatprep.subr.mxu0 0.0
        %667 = vmatpush1.msra.mxu0 0.0
        %668 = vmatprep.subr.mxu0 0.0
        %669 = vmatpush1.msra.mxu0 0.0
        %670 = vmatprep.subr.mxu0 0.0
        %671 = vmatpush1.msra.mxu0 0.0
        %672 = vmatprep.subr.mxu0 0.0
        %673 = vmatpush1.msra.mxu0 0.0
        %674 = vmatprep.subr.mxu0 0.0
        %675 = vmatpush1.msra.mxu0 0.0
        %676 = vmatprep.subr.mxu0 0.0
        %677 = vmatpush1.msra.mxu0 0.0
        %678 = vmatprep.subr.mxu0 0.0
        %679 = vmatpush1.msra.mxu0 0.0
        %680 = vmatprep.mubr.f32.mxu0 0.0
        %681 = vmatmul.mubr.f32.gmra.mrb[0].mxu0 %v448
        %v682 = vpop.f32.mrb[0].mxu0
        %v683 = vadd.f32 0.0, %v682
        %v684 = vpop.f32.mrb[0].mxu0
        %685 = vmatprep.mubr.f32.mxu0 0.0
        %686 = vmatmul.mubr.f32.gmra.mrb[0].mxu0 %v451
        %v687 = vpop.f32.mrb[0].mxu0
        %v688 = vadd.f32 0.0, %v687
        %v689 = vpop.f32.mrb[0].mxu0
        %690 = vmatprep.mubr.f32.mxu0 0.0
        %691 = vmatmul.mubr.f32.gmra.mrb[0].mxu0 %v454
        %v692 = vpop.f32.mrb[0].mxu0
        %v693 = vadd.f32 0.0, %v692
        %v694 = vpop.f32.mrb[0].mxu0
        %695 = vdwg.mxu0
        %vm696 = vcmask 162816
        %697 = vst.msk [vmem:[%s189] sm:$0xff] %vm696, %v523
        %698 = vst.msk [vmem:[%s189 + $0x8] sm:$0xff] %vm696, %v528
        %vm699 = vcmask 158720
        %700 = vst.msk [vmem:[%s189 + $0x10] sm:$0xf] %vm699, %v533
        %701 = vst.msk [vmem:[%s189 + $0x18] sm:$0xff] %vm696, %v603
        %702 = vst.msk [vmem:[%s189 + $0x20] sm:$0xff] %vm696, %v608
        %703 = vst.msk [vmem:[%s189 + $0x28] sm:$0xf] %vm699, %v613
        %704 = vst.msk [vmem:[%s189 + $0x30] sm:$0xff] %vm696, %v683
        %705 = vst.msk [vmem:[%s189 + $0x38] sm:$0xff] %vm696, %v688
        %706 = vst.msk [vmem:[%s189 + $0x40] sm:$0xf] %vm699, %v693
        %s707 = sand.u32 %s96, 1
        %s708 = scalar_lea.sflag [#allocation4], %s707
        %s709 = sand.u32 %s96, 1
        %s710 = smul.addr %s709, 72
        %s711 = scalar_lea.vmem [#allocation5], %s710
        // Predicated region
        $region37: #{tpu_custom_call.1} parent=31 // pred_check
          %p712 = pneg %p106
        $region38: #{tpu_custom_call.1} parent=31 // pred_check_branch
          %714 = sbr.rel (%p712) target = $region40
        $region39: #{tpu_custom_call.1} parent=31 // pred_region
          %s715 = smul.u32 3, %s20
          %s717 = ssub.s32 1152, 1152
          %718 = vsyncadd %s708, %s717
          %s719 = smul.addr %s715, 3
          %s720 = smul.addr %s719, 128
          %s721 = scalar_lea.hbm %s3, %s720
          %s722 = sshll.u32 %s711, 4
          %s723 = int_to_ptr.vmem [resolvable:$true] %s722
          %728 = dma.vmem_to_hbm [thread:$0]  %s723, 1152, %s721, %s708, 128, 128, 8
        $region40: #{tpu_custom_call.1} parent=31 // pred_fallthru
          _
      $region32: #{tpu_custom_call.1} parent=5 // pred_fallthru
        _
      %p729 = scmp.le.s32.totalorder 2, %s15
      // Predicated region
      $region41: #{tpu_custom_call.1} parent=5 // pred_check
        %p730 = pneg %p729
      $region42: #{tpu_custom_call.1} parent=5 // pred_check_branch
        %732 = sbr.rel (%p730) target = $region44
      $region43: #{tpu_custom_call.1} parent=5 // pred_region
        %s733 = ssub.s32 %s15, 2
        // Predicated region
        $region45: #{tpu_custom_call.1} parent=43 // pred_check
          %p734 = pneg %p112
        $region46: #{tpu_custom_call.1} parent=43 // pred_check_branch
          %736 = sbr.rel (%p734) target = $region48
        $region47: #{tpu_custom_call.1} parent=43 // pred_region
          %s737 = sand.u32 %s97, 1
          %s738 = scalar_lea.sflag [#allocation4], %s737
          %s739 = sand.u32 %s97, 1
          %s740 = smul.addr %s739, 72
          %s741 = scalar_lea.vmem [#allocation5], %s740
          %742 = dma.done %s738, 1152
        $region48: #{tpu_custom_call.1} parent=43 // pred_fallthru
          _
      $region44: #{tpu_custom_call.1} parent=5 // pred_fallthru
        _
    $region6: #{tpu_custom_call.1} parent=1 // loop_footer
      %s19 = sadd.s32 1, %s15
    $region7: #{tpu_custom_call.1} parent=1 // loop_footer_branch
      %14 = sbr.rel target = $region3
    $region8: #{tpu_custom_call.1} parent=1 // loop_exit
      _
    %743 = vsyncpa [#allocation3], 1
    %s744 = scalar_lea.sflag [#allocation3], 1
    %745 = vsyncpa %s744, 1
    %746 = vsyncpa [#allocation4], 1
    %s747 = scalar_lea.sflag [#allocation4], 1
    %748 = vsyncpa %s747, 1

</llo_original>
